<compile_context>
chip_gen: v6e
topology: v6e:2x2x1
jax: 0.10.0
libtpu: 0.0.40
codegen_flags: <defaults>
</compile_context>

<pallas_src>
import jax
import jax.numpy as jnp
from jax.experimental import pallas as pl
from jax.experimental.pallas import tpu as pltpu


def _round_up(x: int, m: int) -> int:
    return ((x + m - 1) // m) * m


def _pick_tile(dim_pad: int, unit: int, max_tile: int) -> int:
    """Largest multiple of `unit` that is <= max_tile and divides dim_pad."""
    t = min(max_tile, dim_pad)
    t -= t % unit
    t = max(t, unit)
    while dim_pad % t != 0:
        t -= unit
    return t


def _vmem_capacity_bytes() -> int:
    """Physical VMEM of the current chip; conservative 64 MiB fallback (v7x)."""
    try:
        info = pltpu.get_tpu_info()
        for attr in ("vmem_capacity_bytes", "vmem_bytes", "vmem_size_bytes"):
            cap = getattr(info, attr, None)
            if cap:
                return int(cap)
    except Exception:
        pass
    return 64 * 2**20


# ----------------------------- kernels ------------------------------------ #

def _linear_relu_kernel_ksplit(x_ref, w_ref, b_ref, o_ref, acc_ref):
    """3-D grid (i, j, k): K-split matmul with f32 VMEM accumulator."""
    k = pl.program_id(2)

    @pl.when(k == 0)
    def _():
        acc_ref[...] = jnp.zeros_like(acc_ref)

    acc_ref[...] += jnp.dot(
        x_ref[...], w_ref[...], preferred_element_type=jnp.float32
    )

    @pl.when(k == pl.num_programs(2) - 1)
    def _():
        y = acc_ref[...] + b_ref[...].astype(jnp.float32)
        o_ref[...] = jnp.maximum(y, 0.0).astype(o_ref.dtype)


def _linear_relu_kernel_fused_k(x_ref, w_ref, b_ref, o_ref):
    """2-D grid (i, j): whole-K dot per tile, no scratch, no branches."""
    y = jnp.dot(x_ref[...], w_ref[...], preferred_element_type=jnp.float32)
    y = y + b_ref[...].astype(jnp.float32)
    o_ref[...] = jnp.maximum(y, 0.0).astype(o_ref.dtype)


# --------------------------- param preparation ----------------------------- #

def prepare_params(weight, bias, *, compute_dtype=None):
    """One-time (param-init) layout prep so the forward path never pays it.

    weight: [out_features, in_features]  (PyTorch nn.Linear convention)
    bias:   [out_features]
    Returns (w_kn, b2d, out_features):
      w_kn: [K_pad, N_pad] transposed, lane-padded, optionally cast to
            compute_dtype (e.g. bf16).
      b2d:  [1, N_pad] padded bias, kept in f32 for the f32 epilogue.
    """
    w = jnp.asarray(weight)
    b = jnp.asarray(bias)
    N, K = w.shape
    assert b.shape == (N,)
    K_pad = _round_up(K, 128)
    N_pad = _round_up(N, 128)
    w_kn = w.T
    if compute_dtype is not None:
        w_kn = w_kn.astype(compute_dtype)
    w_kn = jnp.pad(w_kn, ((0, K_pad - K), (0, N_pad - N)))
    b2d = jnp.pad(b.astype(jnp.float32).reshape(1, N), ((0, 0), (0, N_pad - N)))
    return w_kn, b2d, N


# ------------------------------ tile picking ------------------------------- #

def _auto_tiles(M_pad, K_pad, N_pad, sublane, isz_x, isz_w, out_isz,
                budget, big_vmem, tm_req, tn_req, tk_req):
    # Collapse the K grid axis whenever K fits comfortably in a VMEM tile and
    # the caller did not force a tk.
    split_k = not (tk_req is None and K_pad <= 2048)

    tm_max = tm_req if tm_req is not None else (1024 if big_vmem else 512)
    tn_max = tn_req if tn_req is not None else (1024 if big_vmem else 512)
    if split_k:
        tk_max = tk_req if tk_req is not None else (1024 if big_vmem else 512)
    else:
        tk_max = K_pad

    tm_ = _pick_tile(M_pad, sublane, tm_max)
    tn_ = _pick_tile(N_pad, 128, tn_max)
    tk_ = _pick_tile(K_pad, 128, tk_max)

    def est(a, b, c):
        # Double-buffered x / W / bias tiles + double-buffered output tile
        # (+ f32 accumulator scratch on the K-split path).
        e = 2 * (a * c * isz_x + c * b * isz_w + b * 4) + 2 * a * b * out_isz
        if split_k:
            e += a * b * 4
        return e

    # Shrink the largest tile dimension until the working set fits the budget.
    while est(tm_, tn_, tk_) > budget:
        cands = []
        if tm_ > sublane:
            cands.append(("m", tm_))
        if tn_ > 128:
            cands.append(("n", tn_))
        if split_k and tk_ > 128:
            cands.append(("k", tk_))
        if not cands:
            break
        axis = max(cands, key=lambda c: c[1])[0]
        if axis == "m":
            tm_ = _pick_tile(M_pad, sublane, max(sublane, tm_ // 2))
        elif axis == "n":
            tn_ = _pick_tile(N_pad, 128, max(128, tn_ // 2))
        else:
            tk_ = _pick_tile(K_pad, 128, max(128, tk_ // 2))

    return tm_, tn_, tk_, split_k, est(tm_, tn_, tk_)


# ------------------------------- forward ----------------------------------- #

def linear_forward(x, w_kn, b2d, out_features, *, dropout: float = 0.0,
                   compute_dtype=None, tm=None, tn=None, tk=None):
    """Pallas equivalent of biobrigit `linear`: dropout(ReLU(x @ W^T + b)).

    x:            [..., in_features]
    w_kn, b2d:    outputs of prepare_params()
    out_features: logical N (before lane padding)
    """
    out_dtype = x.dtype
    K = x.shape[-1]
    lead_shape = x.shape[:-1]
    x2 = x.reshape(-1, K)
    if compute_dtype is not None:
        x2 = x2.astype(compute_dtype)
    M = x2.shape[0]

    K_pad, N_pad = w_kn.shape
    N = out_features
    assert K_pad == _round_up(K, 128) and N_pad == _round_up(N, 128)
    assert b2d.shape == (1, N_pad)

    isz_x = x2.dtype.itemsize
    isz_w = w_kn.dtype.itemsize
    out_isz = jnp.dtype(out_dtype).itemsize

    # Pad only to hardware minimums (sublane rows, 128 lanes). Tiles divide
    # these padded dims exactly, so there is no pad-to-tile waste.
    sublane = 16 if x2.dtype == jnp.bfloat16 else 8
    M_pad = _round_up(M, sublane)
    if (M_pad, K_pad) != (M, K):
        x2 = jnp.pad(x2, ((0, M_pad - M), (0, K_pad - K)))

    cap = _vmem_capacity_bytes()
    big_vmem = cap >= 96 * 2**20              # v5e/v6e: 128 MiB, v7x: 64 MiB
    budget = int(0.70 * cap)

    tm_, tn_, tk_, split_k, vmem_est = _auto_tiles(
        M_pad, K_pad, N_pad, sublane, isz_x, isz_w, out_isz,
        budget, big_vmem, tm, tn, tk)

    # Scheduler hint with the real re-read factors for the (i, j, k) order.
    cost = pl.CostEstimate(
        flops=2 * M_pad * N_pad * K_pad,
        transcendentals=0,
        bytes_accessed=(
            (N_pad // tn_) * M_pad * K_pad * isz_x      # x re-read per N tile
            + (M_pad // tm_) * K_pad * N_pad * isz_w    # W re-read per M tile
            + (M_pad // tm_) * N_pad * 4                # bias
            + M_pad * N_pad * out_isz                   # output
        ),
    )
    vmem_limit = int(min(max(int(1.5 * vmem_est), 32 * 2**20), int(0.85 * cap)))

    if split_k:
        grid = (M_pad // tm_, N_pad // tn_, K_pad // tk_)
        out = pl.pallas_call(
            _linear_relu_kernel_ksplit,
            out_shape=jax.ShapeDtypeStruct((M_pad, N_pad), out_dtype),
            grid_spec=pltpu.PrefetchScalarGridSpec(
                num_scalar_prefetch=0,
                grid=grid,
                in_specs=[
                    pl.BlockSpec((tm_, tk_), lambda i, j, k: (i, k)),   # x
                    pl.BlockSpec((tk_, tn_), lambda i, j, k: (k, j)),   # W^T
                    pl.BlockSpec((1, tn_), lambda i, j, k: (0, j)),     # bias
                ],
                out_specs=pl.BlockSpec((tm_, tn_), lambda i, j, k: (i, j)),
                scratch_shapes=[pltpu.VMEM((tm_, tn_), jnp.float32)],
            ),
            compiler_params=pltpu.CompilerParams(
                # TODO(synk): use pltpu.CORE_PARALLEL on the M axis for v7x's
                # two TensorCores once per-chip detection is plumbed through.
                dimension_semantics=("parallel", "parallel", "arbitrary"),
                vmem_limit_bytes=vmem_limit,
            ),
            cost_estimate=cost,
        )(x2, w_kn, b2d)
    else:
        grid = (M_pad // tm_, N_pad // tn_)
        out = pl.pallas_call(
            _linear_relu_kernel_fused_k,
            out_shape=jax.ShapeDtypeStruct((M_pad, N_pad), out_dtype),
            grid_spec=pltpu.PrefetchScalarGridSpec(
                num_scalar_prefetch=0,
                grid=grid,
                in_specs=[
                    pl.BlockSpec((tm_, K_pad), lambda i, j: (i, 0)),    # x
                    # TODO(synk): pipeline_mode=pl.Buffered(3) on the W spec
                    # for the tiny-M weight-streaming-bound regime.
                    pl.BlockSpec((K_pad, tn_), lambda i, j: (0, j)),    # W^T
                    pl.BlockSpec((1, tn_), lambda i, j: (0, j)),        # bias
                ],
                out_specs=pl.BlockSpec((tm_, tn_), lambda i, j: (i, j)),
            ),
            compiler_params=pltpu.CompilerParams(
                dimension_semantics=("parallel", "parallel"),
                vmem_limit_bytes=vmem_limit,
            ),
            cost_estimate=cost,
        )(x2, w_kn, b2d)

    out = out[:M, :N]

    # nn.Dropout(p) is the identity in eval mode (and for p == 0).
    # TODO(synk): training-mode dropout (p > 0) would need pltpu.prng_* masking.
    del dropout
    return out.reshape(lead_shape + (N,))


if __name__ == "__main__":
    key = jax.random.PRNGKey(0)
    kx, kw, kb = jax.random.split(key, 3)

    # Small config consistent with the module (in=32, out=64, batch=8).
    in_features, out_features, batch = 32, 64, 8
    x = jax.random.normal(kx, (batch, in_features), dtype=jnp.float32)
    # PyTorch nn.Linear weight convention: [out_features, in_features]
    weight = jax.random.normal(
        kw, (out_features, in_features), dtype=jnp.float32) * 0.1
    bias = jax.random.normal(kb, (out_features,), dtype=jnp.float32) * 0.1

    w_kn, b2d, nf = prepare_params(weight, bias)      # one-time, param-init
    y = linear_forward(x, w_kn, b2d, nf)
    jax.block_until_ready(y)
    ref = jnp.maximum(x @ weight.T + bias, 0.0)
    assert y.shape == (batch, out_features)
    assert jnp.allclose(y, ref, atol=1e-5, rtol=1e-5)

    # Non-tile-multiple shape: exercises the K-collapsed 2-D grid with tiles
    # that divide the lane-padded dims exactly (no pad-to-tile waste).
    M2, K2, N2 = 512, 384, 640
    x2 = jax.random.normal(jax.random.PRNGKey(1), (M2, K2), dtype=jnp.float32)
    w2 = jax.random.normal(jax.random.PRNGKey(2), (N2, K2), dtype=jnp.float32) * 0.05
    b2 = jax.random.normal(jax.random.PRNGKey(3), (N2,), dtype=jnp.float32) * 0.05
    ref2 = jnp.maximum(x2 @ w2.T + b2, 0.0)

    w2_kn, b2_2d, n2 = prepare_params(w2, b2)
    y2 = linear_forward(x2, w2_kn, b2_2d, n2)
    jax.block_until_ready(y2)
    assert jnp.allclose(y2, ref2, atol=1e-4, rtol=1e-4)

    # Same layer with bf16 operands + f32 accumulation (fast MXU path).
    w2_bf, b2_bf, _ = prepare_params(w2, b2, compute_dtype=jnp.bfloat16)
    y2_bf = linear_forward(x2, w2_bf, b2_bf, n2, compute_dtype=jnp.bfloat16)
    jax.block_until_ready(y2_bf)
    assert jnp.allclose(y2_bf, ref2, atol=5e-2, rtol=5e-2)

    # Explicit tk forces the 3-D K-split accumulator path.
    y2_split = linear_forward(x2, w2_kn, b2_2d, n2, tm=256, tn=128, tk=128)
    jax.block_until_ready(y2_split)
    assert jnp.allclose(y2_split, ref2, atol=1e-4, rtol=1e-4)

    print("KERNEL_OK")
</pallas_src>

<mosaic_0001>
module attributes {stable_mosaic.version = 11 : i64} {
  func.func @_linear_relu_kernel_fused_k(%arg0: i32, %arg1: i32, %arg2: memref<8x128xf32, #tpu.memory_space<vmem>>, %arg3: memref<128x128xf32, #tpu.memory_space<vmem>>, %arg4: memref<1x128xf32, #tpu.memory_space<vmem>>, %arg5: memref<8x128xf32, #tpu.memory_space<vmem>>) attributes {dimension_semantics = [#tpu.dimension_semantics<parallel>, #tpu.dimension_semantics<parallel>], iteration_bounds = array<i64: 1, 1>, scalar_prefetch = 0 : i64, scratch_operands = 0 : i64, tpu.core_type = #tpu.core_type<tc>, window_params = [{transform_indices = @transform_0, window_bounds = array<i64: 8, 128>}, {transform_indices = @transform_1, window_bounds = array<i64: 128, 128>}, {transform_indices = @transform_2, window_bounds = array<i64: 1, 128>}, {transform_indices = @transform_3, window_bounds = array<i64: 8, 128>}]} {
    %c0 = arith.constant 0 : index
    %c0_0 = arith.constant 0 : index
    %0 = vector.load %arg2[%c0, %c0_0] : memref<8x128xf32, #tpu.memory_space<vmem>>, vector<8x128xf32>
    %c0_1 = arith.constant 0 : index
    %c0_2 = arith.constant 0 : index
    %1 = vector.load %arg3[%c0_1, %c0_2] : memref<128x128xf32, #tpu.memory_space<vmem>>, vector<128x128xf32>
    %cst = arith.constant dense<0.000000e+00> : vector<8x128xf32>
    %2 = tpu.matmul %0, %1, %cst {dimension_numbers = #tpu.dot_dimension_numbers<[1], [0], [0], [1], [0, 0, 1, 1], [], []>} : vector<8x128xf32>, vector<128x128xf32>, vector<8x128xf32> -> vector<8x128xf32>
    %c0_3 = arith.constant 0 : index
    %c0_4 = arith.constant 0 : index
    %3 = vector.load %arg4[%c0_3, %c0_4] : memref<1x128xf32, #tpu.memory_space<vmem>>, vector<1x128xf32>
    %4 = vector.broadcast %3 : vector<1x128xf32> to vector<8x128xf32>
    %5 = arith.addf %2, %4 : vector<8x128xf32>
    %cst_5 = arith.constant 0.000000e+00 : f32
    %6 = vector.broadcast %cst_5 : f32 to vector<8x128xf32>
    %7 = arith.maximumf %5, %6 : vector<8x128xf32>
    %c0_6 = arith.constant 0 : index
    %c0_7 = arith.constant 0 : index
    %8 = vector.load %arg5[%c0_6, %c0_7] : memref<8x128xf32, #tpu.memory_space<vmem>>, vector<8x128xf32>
    tpu.vector_store %arg5[%c0_6, %c0_7], %7 {strides = array<i32>} : memref<8x128xf32, #tpu.memory_space<vmem>>, vector<8x128xf32>,
    return
  }
  func.func @transform_0(%arg0: i32, %arg1: i32) -> (i32, i32) {
    %c0_i32 = arith.constant 0 : i32
    %c0_i32_0 = arith.constant 0 : i32
    return %arg0, %c0_i32 : i32, i32
  }
  func.func @transform_1(%arg0: i32, %arg1: i32) -> (i32, i32) {
    %c0_i32 = arith.constant 0 : i32
    %c0_i32_0 = arith.constant 0 : i32
    return %c0_i32, %arg1 : i32, i32
  }
  func.func @transform_2(%arg0: i32, %arg1: i32) -> (i32, i32) {
    %c0_i32 = arith.constant 0 : i32
    %c0_i32_0 = arith.constant 0 : i32
    return %c0_i32, %arg1 : i32, i32
  }
  func.func @transform_3(%arg0: i32, %arg1: i32) -> (i32, i32) {
    %c0_i32 = arith.constant 0 : i32
    return %arg0, %arg1 : i32, i32
  }
}

</mosaic_0001>

<llo_original>
// kernel: tpu_custom_call.1
$region0: #{tpu_custom_call.1}
  #allocation0 [shape = 'u32[]', space=smem, size = 0x4, offset = 0x4, fixed_abs, tag = 'smem constant byte address 0x4 - core index']
  #allocation1 [shape = 'u32[144,128]{1,0:T(1,128)}', space=vmem, size = 0x12000, scoped, tag = 'internal scratch']
  %s0 = inlined_call_operand.hbm [shape: f32[8,128], index: 0, kind: input, shape index: {}]
  %s1 = inlined_call_operand.hbm [shape: f32[128,128], index: 1, kind: input, shape index: {}]
  %s2 = inlined_call_operand.vmem [shape: f32[1,128], index: 2, kind: input, shape index: {}]
  %s3 = inlined_call_operand.hbm [shape: f32[8,128], index: 3, kind: output, shape index: {}]
  %s4 = sld [smem:[#allocation0]]
  $region30: #{tpu_custom_call.1} parent=0
    _
  %s6 = ssub.s32 1, %s4
  %s7 = scalar_select 0, %s6, %s4
  $region1: #{tpu_custom_call.1} parent=0
    #allocation2 [shape = 'u8[4096]{0}', space=vmem, size = 0x1000, scoped, tag = 'input window, operand 0, single buffered']
    #allocation3 [shape = 's32[1]{0}', space=sflag, size = 0x4, scoped, tag = 'scoped memory for tpu_custom_call.1']
    #allocation4 [shape = 's32[1]{0}', space=sflag, size = 0x4, scoped, tag = 'scoped memory for tpu_custom_call.1']
    #allocation5 [shape = 'u8[65536]{0}', space=vmem, size = 0x10000, scoped, tag = 'input window, operand 1, single buffered']
    #allocation6 [shape = 's32[1]{0}', space=sflag, size = 0x4, scoped, tag = 'scoped memory for tpu_custom_call.1']
    #allocation7 [shape = 'u8[4096]{0}', space=vmem, size = 0x1000, scoped, tag = 'output window, operand 0, single buffered']
    %8 = vsyncpa [#allocation3], 0
    %9 = vsyncpa [#allocation6], 0
    %10 = vsyncpa [#allocation4], 0
    // Predicated region
    $region2: #{tpu_custom_call.1} parent=1 // pred_check
      _
    $region3: #{tpu_custom_call.1} parent=1 // pred_check_branch
      %12 = sbr.rel (0) target = $region5
    $region4: #{tpu_custom_call.1} parent=1 // pred_region
      %s14 = ssub.s32 128, 128
      %15 = vsyncadd [#allocation3], %s14
      %s17 = sshll.u32 [#allocation2], 4
      %s18 = int_to_ptr.vmem [resolvable:$true] %s17
      %20 = dma.hbm_to_vmem [thread:$0]  %s0, 128, %s18, [#allocation3]
    $region5: #{tpu_custom_call.1} parent=1 // pred_fallthru
      _
    // Predicated region
    $region6: #{tpu_custom_call.1} parent=1 // pred_check
      _
    $region7: #{tpu_custom_call.1} parent=1 // pred_check_branch
      %22 = sbr.rel (0) target = $region9
    $region8: #{tpu_custom_call.1} parent=1 // pred_region
      %s24 = ssub.s32 2048, 2048
      %25 = vsyncadd [#allocation6], %s24
      %s26 = sshll.u32 [#allocation5], 4
      %s27 = int_to_ptr.vmem [resolvable:$true] %s26
      %32 = dma.hbm_to_vmem [thread:$0]  %s1, 2048, %s27, [#allocation6], 128, 128, 8
    $region9: #{tpu_custom_call.1} parent=1 // pred_fallthru
      _
    // Predicated region
    $region10: #{tpu_custom_call.1} parent=1 // pred_check
      _
    $region11: #{tpu_custom_call.1} parent=1 // pred_check_branch
      %34 = sbr.rel (0) target = $region13
    $region12: #{tpu_custom_call.1} parent=1 // pred_region
      _
    $region13: #{tpu_custom_call.1} parent=1 // pred_fallthru
      _
    // Predicated region
    $region14: #{tpu_custom_call.1} parent=1 // pred_check
      _
    $region15: #{tpu_custom_call.1} parent=1 // pred_check_branch
      %36 = sbr.rel (0) target = $region17
    $region16: #{tpu_custom_call.1} parent=1 // pred_region
      %37 = dma.done [#allocation3], 128
    $region17: #{tpu_custom_call.1} parent=1 // pred_fallthru
      _
    // Predicated region
    $region18: #{tpu_custom_call.1} parent=1 // pred_check
      _
    $region19: #{tpu_custom_call.1} parent=1 // pred_check_branch
      %39 = sbr.rel (0) target = $region21
    $region20: #{tpu_custom_call.1} parent=1 // pred_region
      %40 = dma.done [#allocation6], 2048
    $region21: #{tpu_custom_call.1} parent=1 // pred_fallthru
      _
    %v41 = vld [vmem:[#allocation2] sm:$0xff]
    %v42 = vld [vmem:[#allocation5] sm:$0xff]
    %v43 = vld [vmem:[#allocation5 + $0x8] sm:$0xff]
    %v44 = vld [vmem:[#allocation5 + $0x10] sm:$0xff]
    %v45 = vld [vmem:[#allocation5 + $0x18] sm:$0xff]
    %v46 = vld [vmem:[#allocation5 + $0x20] sm:$0xff]
    %v47 = vld [vmem:[#allocation5 + $0x28] sm:$0xff]
    %v48 = vld [vmem:[#allocation5 + $0x30] sm:$0xff]
    %v49 = vld [vmem:[#allocation5 + $0x38] sm:$0xff]
    %v50 = vld [vmem:[#allocation5 + $0x40] sm:$0xff]
    %v51 = vld [vmem:[#allocation5 + $0x48] sm:$0xff]
    %v52 = vld [vmem:[#allocation5 + $0x50] sm:$0xff]
    %v53 = vld [vmem:[#allocation5 + $0x58] sm:$0xff]
    %v54 = vld [vmem:[#allocation5 + $0x60] sm:$0xff]
    %v55 = vld [vmem:[#allocation5 + $0x68] sm:$0xff]
    %v56 = vld [vmem:[#allocation5 + $0x70] sm:$0xff]
    %v57 = vld [vmem:[#allocation5 + $0x78] sm:$0xff]
    %v58 = vld [vmem:[%s2] sm:$0x1]
    %v60 = vlaneseq
    %v61 = vshrl.u32 %v60, 7
    %v62 = vsub.s32 0, %v61
    %v63 = vrot.slane %v58, %v62
    %65 = vmatprep.subr.mxu0 0.0
    %66 = vmatpush1.msra.mxu0 %v57
    %67 = vmatprep.subr.mxu0 0.0
    %68 = vmatpush1.msra.mxu0 %v56
    %69 = vmatprep.subr.mxu0 0.0
    %70 = vmatpush1.msra.mxu0 %v55
    %71 = vmatprep.subr.mxu0 0.0
    %72 = vmatpush1.msra.mxu0 %v54
    %73 = vmatprep.subr.mxu0 0.0
    %74 = vmatpush1.msra.mxu0 %v53
    %75 = vmatprep.subr.mxu0 0.0
    %76 = vmatpush1.msra.mxu0 %v52
    %77 = vmatprep.subr.mxu0 0.0
    %78 = vmatpush1.msra.mxu0 %v51
    %79 = vmatprep.subr.mxu0 0.0
    %80 = vmatpush1.msra.mxu0 %v50
    %81 = vmatprep.subr.mxu0 0.0
    %82 = vmatpush1.msra.mxu0 %v49
    %83 = vmatprep.subr.mxu0 0.0
    %84 = vmatpush1.msra.mxu0 %v48
    %85 = vmatprep.subr.mxu0 0.0
    %86 = vmatpush1.msra.mxu0 %v47
    %87 = vmatprep.subr.mxu0 0.0
    %88 = vmatpush1.msra.mxu0 %v46
    %89 = vmatprep.subr.mxu0 0.0
    %90 = vmatpush1.msra.mxu0 %v45
    %91 = vmatprep.subr.mxu0 0.0
    %92 = vmatpush1.msra.mxu0 %v44
    %93 = vmatprep.subr.mxu0 0.0
    %94 = vmatpush1.msra.mxu0 %v43
    %95 = vmatprep.subr.mxu0 0.0
    %96 = vmatpush1.msra.mxu0 %v42
    %97 = vmatprep.subr.mxu0 0.0
    %98 = vmatpush2.msra.mxu0 0.0
    %99 = vmatprep.subr.mxu0 0.0
    %100 = vmatpush2.msra.mxu0 0.0
    %101 = vmatprep.subr.mxu0 0.0
    %102 = vmatpush2.msra.mxu0 0.0
    %103 = vmatprep.subr.mxu0 0.0
    %104 = vmatpush2.msra.mxu0 0.0
    %105 = vmatprep.subr.mxu0 0.0
    %106 = vmatpush2.msra.mxu0 0.0
    %107 = vmatprep.subr.mxu0 0.0
    %108 = vmatpush2.msra.mxu0 0.0
    %109 = vmatprep.subr.mxu0 0.0
    %110 = vmatpush2.msra.mxu0 0.0
    %111 = vmatprep.subr.mxu0 0.0
    %112 = vmatpush2.msra.mxu0 0.0
    %113 = vmatprep.subr.mxu0 0.0
    %114 = vmatpush2.msra.mxu0 0.0
    %115 = vmatprep.subr.mxu0 0.0
    %116 = vmatpush2.msra.mxu0 0.0
    %117 = vmatprep.subr.mxu0 0.0
    %118 = vmatpush2.msra.mxu0 0.0
    %119 = vmatprep.subr.mxu0 0.0
    %120 = vmatpush2.msra.mxu0 0.0
    %121 = vmatprep.subr.mxu0 0.0
    %122 = vmatpush2.msra.mxu0 0.0
    %123 = vmatprep.subr.mxu0 0.0
    %124 = vmatpush2.msra.mxu0 0.0
    %125 = vmatprep.subr.mxu0 0.0
    %126 = vmatpush2.msra.mxu0 0.0
    %127 = vmatprep.subr.mxu0 0.0
    %128 = vmatpush2.msra.mxu0 0.0
    %129 = vmatprep.mubr.f32.mxu0 0.0
    %130 = vmatmul.mubr.f32.gmra.mxu0 %v41
    %v131 = vpop.f32.mrf.mxu0
    %v132 = vadd.f32 %v63, %v131
    %v133 = vpop.f32.mrf.mxu0
    %134 = vdwg.mxu0
    %v135 = vmax.f32 %v132, 0.0
    %136 = vst [vmem:[#allocation7] sm:$0xff] %v135
    // Predicated region
    $region22: #{tpu_custom_call.1} parent=1 // pred_check
      _
    $region23: #{tpu_custom_call.1} parent=1 // pred_check_branch
      %138 = sbr.rel (0) target = $region25
    $region24: #{tpu_custom_call.1} parent=1 // pred_region
      %s140 = ssub.s32 128, 128
      %141 = vsyncadd [#allocation4], %s140
      %s143 = sshll.u32 [#allocation7], 4
      %s144 = int_to_ptr.vmem [resolvable:$true] %s143
      %146 = dma.vmem_to_hbm [thread:$0]  %s144, 128, %s3, [#allocation4]
    $region25: #{tpu_custom_call.1} parent=1 // pred_fallthru
      _
    // Predicated region
    $region26: #{tpu_custom_call.1} parent=1 // pred_check
      _
    $region27: #{tpu_custom_call.1} parent=1 // pred_check_branch
      %148 = sbr.rel (0) target = $region29
    $region28: #{tpu_custom_call.1} parent=1 // pred_region
      %149 = dma.done [#allocation4], 128
    $region29: #{tpu_custom_call.1} parent=1 // pred_fallthru
      _
    %150 = vsyncpa [#allocation3], 1
    %151 = vsyncpa [#allocation6], 1
    %152 = vsyncpa [#allocation4], 1

</llo_original>
